<compile_context>
chip_gen: v5e
topology: v5e:2x2
jax: 0.10.0
libtpu: 0.0.40
codegen_flags: <defaults>
</compile_context>

<pallas_src>
import jax
import jax.numpy as jnp
from jax.experimental import pallas as pl
from jax.experimental.pallas import tpu as pltpu


def _head_kernel(x_ref, v_ref,
                 wfa_ref, bfa_ref,
                 wvx_ref, wvv_ref, bv_ref,
                 wr_ref, br_ref,
                 out_ref):
    x = x_ref[...]                               # [tm, ninput] f32
    v = v_ref[...]                               # [tm, nview]  f32
    ninput = wfa_ref.shape[0]

    # Fused feature+alpha matmul: W_fa = [W_feature | W_alpha] -> [tm, ninput+1]
    fa = jnp.dot(x, wfa_ref[...], preferred_element_type=jnp.float32) + bfa_ref[...]
    feat = fa[:, :ninput]                        # feature_fc(x)
    sigma = jnp.maximum(fa[:, ninput:], 0.0)     # relu(alpha(x)) -> [tm, 1]

    # view_fc(cat([feature, view_dirs])) == feat @ Wvx + view @ Wvv + b
    h = (jnp.dot(feat, wvx_ref[...], preferred_element_type=jnp.float32)
         + jnp.dot(v, wvv_ref[...], preferred_element_type=jnp.float32)
         + bv_ref[...])
    h = jnp.maximum(h, 0.0)                      # relu

    # rgb = sigmoid(rgb_fc(h)) -> [tm, 3]
    rgb = jnp.dot(h, wr_ref[...], preferred_element_type=jnp.float32) + br_ref[...]
    rgb = jax.nn.sigmoid(rgb)

    # Single lane-dense fused output: [sigma | rgb] -> [tm, 4]
    out_ref[...] = jnp.concatenate([sigma, rgb], axis=-1).astype(out_ref.dtype)


def view_dependent_head(x, view_dirs, params, *, tm=2048):
    N, ninput = x.shape
    nview = view_dirs.shape[1]
    H = ninput // 2

    wf, bf, wa, ba, wvx, wvv, bv, wr, br = params

    # Fuse alpha into the feature matmul (numerically exact: independent
    # output columns of the same contraction).
    wfa = jnp.concatenate([wf, wa], axis=1)      # [ninput, ninput+1]
    bfa = jnp.concatenate([bf, ba], axis=1)      # [1, ninput+1]

    # Tile sizing: as large as possible to amortize the ~0.35us/step overhead,
    # but keep >= 2 grid steps when possible (v7x has 2 TCs) and a multiple of
    # 8 rows (sublane granularity).  Ragged N is handled by zero-padding.
    half = max(N // 2, 1)
    tm_eff = max(8, min(tm, pl.cdiv(half, 8) * 8))
    n_pad = pl.cdiv(N, tm_eff) * tm_eff
    if n_pad != N:
        x = jnp.pad(x, ((0, n_pad - N), (0, 0)))
        view_dirs = jnp.pad(view_dirs, ((0, n_pad - N), (0, 0)))

    grid = (n_pad // tm_eff,)

    row_spec = lambda width: pl.BlockSpec((tm_eff, width), lambda i: (i, 0))
    full = lambda shape: pl.BlockSpec(shape, lambda i: (0, 0))

    grid_spec = pltpu.PrefetchScalarGridSpec(
        num_scalar_prefetch=0,
        grid=grid,
        in_specs=[
            row_spec(ninput),                    # x
            row_spec(nview),                     # view_dirs
            full((ninput, ninput + 1)),          # [W_feature | W_alpha]
            full((1, ninput + 1)),               # [b_feature | b_alpha]
            full((ninput, H)),                   # W_view[:ninput]
            full((nview, H)),                    # W_view[ninput:]
            full((1, H)),                        # b_view
            full((H, 3)),                        # W_rgb
            full((1, 3)),                        # b_rgb
        ],
        out_specs=pl.BlockSpec((tm_eff, 4), lambda i: (i, 0)),   # [sigma | rgb]
    )

    weight_bytes = 4 * (wfa.size + bfa.size + wvx.size + wvv.size
                        + bv.size + wr.size + br.size)
    cost = pl.CostEstimate(
        flops=2 * n_pad * (ninput * (ninput + 1) + ninput * H + nview * H + H * 3),
        transcendentals=3 * n_pad,               # sigmoid on 3 rgb channels
        bytes_accessed=4 * n_pad * (ninput + nview + 4) + weight_bytes,
    )

    out = pl.pallas_call(
        _head_kernel,
        out_shape=jax.ShapeDtypeStruct((n_pad, 4), jnp.float32),
        grid_spec=grid_spec,
        compiler_params=pltpu.CompilerParams(
            dimension_semantics=("parallel",),
            vmem_limit_bytes=48 * 1024 * 1024,
        ),
        cost_estimate=cost,
    )(x, view_dirs, wfa, bfa, wvx, wvv, bv, wr, br)

    sigma = out[:N, 0:1]
    rgb = out[:N, 1:4]
    return sigma, rgb


def init_params(key, ninput, nview):
    H = ninput // 2
    keys = jax.random.split(key, 9)
    s = 0.1
    wf  = s * jax.random.normal(keys[0], (ninput, ninput), jnp.float32)
    bf  = s * jax.random.normal(keys[1], (1, ninput), jnp.float32)
    wa  = s * jax.random.normal(keys[2], (ninput, 1), jnp.float32)
    ba  = s * jax.random.normal(keys[3], (1, 1), jnp.float32)
    wvx = s * jax.random.normal(keys[4], (ninput, H), jnp.float32)
    wvv = s * jax.random.normal(keys[5], (nview, H), jnp.float32)
    bv  = s * jax.random.normal(keys[6], (1, H), jnp.float32)
    wr  = s * jax.random.normal(keys[7], (H, 3), jnp.float32)
    br  = s * jax.random.normal(keys[8], (1, 3), jnp.float32)
    return (wf, bf, wa, ba, wvx, wvv, bv, wr, br)


def reference(x, view_dirs, params):
    wf, bf, wa, ba, wvx, wvv, bv, wr, br = params
    feature = x @ wf + bf
    sigma = jnp.maximum(x @ wa + ba, 0.0)
    feat_cat = jnp.concatenate([feature, view_dirs], axis=-1)
    wv = jnp.concatenate([wvx, wvv], axis=0)
    h = jnp.maximum(feat_cat @ wv + bv, 0.0)
    rgb = jax.nn.sigmoid(h @ wr + br)
    return sigma, rgb


if __name__ == "__main__":
    ninput, nview = 32, 3
    N = 200                                      # deliberately not a tile multiple
    key = jax.random.PRNGKey(0)
    kx, kv, kp = jax.random.split(key, 3)

    x = jax.random.normal(kx, (N, ninput), jnp.float32)
    view_dirs = jax.random.normal(kv, (N, nview), jnp.float32)
    params = init_params(kp, ninput, nview)

    sigma, rgb = view_dependent_head(x, view_dirs, params)
    jax.block_until_ready((sigma, rgb))

    sigma_ref, rgb_ref = reference(x, view_dirs, params)
    assert sigma.shape == (N, 1) and rgb.shape == (N, 3)
    assert jnp.allclose(sigma, sigma_ref, atol=1e-5, rtol=1e-5)
    assert jnp.allclose(rgb, rgb_ref, atol=1e-5, rtol=1e-5)

    print("KERNEL_OK")
</pallas_src>

<mosaic_0001>
module attributes {stable_mosaic.version = 11 : i64} {
  func.func @_head_kernel(%arg0: i32, %arg1: memref<104x32xf32, #tpu.memory_space<vmem>>, %arg2: memref<104x3xf32, #tpu.memory_space<vmem>>, %arg3: memref<32x33xf32, #tpu.memory_space<vmem>>, %arg4: memref<1x33xf32, #tpu.memory_space<vmem>>, %arg5: memref<32x16xf32, #tpu.memory_space<vmem>>, %arg6: memref<3x16xf32, #tpu.memory_space<vmem>>, %arg7: memref<1x16xf32, #tpu.memory_space<vmem>>, %arg8: memref<16x3xf32, #tpu.memory_space<vmem>>, %arg9: memref<1x3xf32, #tpu.memory_space<vmem>>, %arg10: memref<104x4xf32, #tpu.memory_space<vmem>>) attributes {dimension_semantics = [#tpu.dimension_semantics<parallel>], iteration_bounds = array<i64: 2>, scalar_prefetch = 0 : i64, scratch_operands = 0 : i64, tpu.core_type = #tpu.core_type<tc>, window_params = [{transform_indices = @transform_0, window_bounds = array<i64: 104, 32>}, {transform_indices = @transform_1, window_bounds = array<i64: 104, 3>}, {pipeline_mode = #tpu.pipeline_mode<synchronous>, transform_indices = @transform_2, window_bounds = array<i64: 32, 33>}, {pipeline_mode = #tpu.pipeline_mode<synchronous>, transform_indices = @transform_3, window_bounds = array<i64: 1, 33>}, {pipeline_mode = #tpu.pipeline_mode<synchronous>, transform_indices = @transform_4, window_bounds = array<i64: 32, 16>}, {pipeline_mode = #tpu.pipeline_mode<synchronous>, transform_indices = @transform_5, window_bounds = array<i64: 3, 16>}, {pipeline_mode = #tpu.pipeline_mode<synchronous>, transform_indices = @transform_6, window_bounds = array<i64: 1, 16>}, {pipeline_mode = #tpu.pipeline_mode<synchronous>, transform_indices = @transform_7, window_bounds = array<i64: 16, 3>}, {pipeline_mode = #tpu.pipeline_mode<synchronous>, transform_indices = @transform_8, window_bounds = array<i64: 1, 3>}, {transform_indices = @transform_9, window_bounds = array<i64: 104, 4>}]} {
    %c0 = arith.constant 0 : index
    %c0_0 = arith.constant 0 : index
    %0 = vector.load %arg1[%c0, %c0_0] : memref<104x32xf32, #tpu.memory_space<vmem>>, vector<104x32xf32>
    %c0_1 = arith.constant 0 : index
    %c0_2 = arith.constant 0 : index
    %1 = vector.load %arg2[%c0_1, %c0_2] : memref<104x3xf32, #tpu.memory_space<vmem>>, vector<104x3xf32>
    %c0_3 = arith.constant 0 : index
    %c0_4 = arith.constant 0 : index
    %2 = vector.load %arg3[%c0_3, %c0_4] : memref<32x33xf32, #tpu.memory_space<vmem>>, vector<32x33xf32>
    %cst = arith.constant dense<0.000000e+00> : vector<104x33xf32>
    %3 = tpu.matmul %0, %2, %cst {dimension_numbers = #tpu.dot_dimension_numbers<[1], [0], [0], [1], [0, 0, 1, 1], [], []>} : vector<104x32xf32>, vector<32x33xf32>, vector<104x33xf32> -> vector<104x33xf32>
    %c0_5 = arith.constant 0 : index
    %c0_6 = arith.constant 0 : index
    %4 = vector.load %arg4[%c0_5, %c0_6] : memref<1x33xf32, #tpu.memory_space<vmem>>, vector<1x33xf32>
    %5 = vector.broadcast %4 : vector<1x33xf32> to vector<104x33xf32>
    %6 = arith.addf %3, %5 : vector<104x33xf32>
    %7 = vector.extract_strided_slice %6 {offsets = [0, 0], sizes = [104, 32], strides = [1, 1]} : vector<104x33xf32> to vector<104x32xf32>
    %8 = vector.extract_strided_slice %6 {offsets = [0, 32], sizes = [104, 1], strides = [1, 1]} : vector<104x33xf32> to vector<104x1xf32>
    %cst_7 = arith.constant 0.000000e+00 : f32
    %9 = vector.broadcast %cst_7 : f32 to vector<104x1xf32>
    %10 = arith.maximumf %8, %9 : vector<104x1xf32>
    %c0_8 = arith.constant 0 : index
    %c0_9 = arith.constant 0 : index
    %11 = vector.load %arg5[%c0_8, %c0_9] : memref<32x16xf32, #tpu.memory_space<vmem>>, vector<32x16xf32>
    %cst_10 = arith.constant dense<0.000000e+00> : vector<104x16xf32>
    %12 = tpu.matmul %7, %11, %cst_10 {dimension_numbers = #tpu.dot_dimension_numbers<[1], [0], [0], [1], [0, 0, 1, 1], [], []>} : vector<104x32xf32>, vector<32x16xf32>, vector<104x16xf32> -> vector<104x16xf32>
    %c0_11 = arith.constant 0 : index
    %c0_12 = arith.constant 0 : index
    %13 = vector.load %arg6[%c0_11, %c0_12] : memref<3x16xf32, #tpu.memory_space<vmem>>, vector<3x16xf32>
    %cst_13 = arith.constant dense<0.000000e+00> : vector<104x16xf32>
    %14 = tpu.matmul %1, %13, %cst_13 {dimension_numbers = #tpu.dot_dimension_numbers<[1], [0], [0], [1], [0, 0, 1, 1], [], []>} : vector<104x3xf32>, vector<3x16xf32>, vector<104x16xf32> -> vector<104x16xf32>
    %15 = arith.addf %12, %14 : vector<104x16xf32>
    %c0_14 = arith.constant 0 : index
    %c0_15 = arith.constant 0 : index
    %16 = vector.load %arg7[%c0_14, %c0_15] : memref<1x16xf32, #tpu.memory_space<vmem>>, vector<1x16xf32>
    %17 = vector.broadcast %16 : vector<1x16xf32> to vector<104x16xf32>
    %18 = arith.addf %15, %17 : vector<104x16xf32>
    %cst_16 = arith.constant 0.000000e+00 : f32
    %19 = vector.broadcast %cst_16 : f32 to vector<104x16xf32>
    %20 = arith.maximumf %18, %19 : vector<104x16xf32>
    %c0_17 = arith.constant 0 : index
    %c0_18 = arith.constant 0 : index
    %21 = vector.load %arg8[%c0_17, %c0_18] : memref<16x3xf32, #tpu.memory_space<vmem>>, vector<16x3xf32>
    %cst_19 = arith.constant dense<0.000000e+00> : vector<104x3xf32>
    %22 = tpu.matmul %20, %21, %cst_19 {dimension_numbers = #tpu.dot_dimension_numbers<[1], [0], [0], [1], [0, 0, 1, 1], [], []>} : vector<104x16xf32>, vector<16x3xf32>, vector<104x3xf32> -> vector<104x3xf32>
    %c0_20 = arith.constant 0 : index
    %c0_21 = arith.constant 0 : index
    %23 = vector.load %arg9[%c0_20, %c0_21] : memref<1x3xf32, #tpu.memory_space<vmem>>, vector<1x3xf32>
    %24 = vector.broadcast %23 : vector<1x3xf32> to vector<104x3xf32>
    %25 = arith.addf %22, %24 : vector<104x3xf32>
    %26 = arith.negf %25 : vector<104x3xf32>
    %27 = math.exp %26 : vector<104x3xf32>
    %cst_22 = arith.constant 1.000000e+00 : f32
    %28 = vector.broadcast %cst_22 : f32 to vector<104x3xf32>
    %29 = arith.addf %28, %27 : vector<104x3xf32>
    %30 = arith.divf %28, %29 : vector<104x3xf32>
    %31 = tpu.concatenate %10, %30 in 1 : vector<104x1xf32>, vector<104x3xf32> -> vector<104x4xf32>
    %c0_23 = arith.constant 0 : index
    %c0_24 = arith.constant 0 : index
    %32 = vector.load %arg10[%c0_23, %c0_24] : memref<104x4xf32, #tpu.memory_space<vmem>>, vector<104x4xf32>
    tpu.vector_store %arg10[%c0_23, %c0_24], %31 {strides = array<i32>} : memref<104x4xf32, #tpu.memory_space<vmem>>, vector<104x4xf32>,
    return
  }
  func.func @transform_0(%arg0: i32) -> (i32, i32) {
    %c0_i32 = arith.constant 0 : i32
    %c0_i32_0 = arith.constant 0 : i32
    return %arg0, %c0_i32 : i32, i32
  }
  func.func @transform_1(%arg0: i32) -> (i32, i32) {
    %c0_i32 = arith.constant 0 : i32
    %c0_i32_0 = arith.constant 0 : i32
    return %arg0, %c0_i32 : i32, i32
  }
  func.func @transform_2(%arg0: i32) -> (i32, i32) {
    %c0_i32 = arith.constant 0 : i32
    %c0_i32_0 = arith.constant 0 : i32
    %c0_i32_1 = arith.constant 0 : i32
    return %c0_i32, %c0_i32_0 : i32, i32
  }
  func.func @transform_3(%arg0: i32) -> (i32, i32) {
    %c0_i32 = arith.constant 0 : i32
    %c0_i32_0 = arith.constant 0 : i32
    %c0_i32_1 = arith.constant 0 : i32
    return %c0_i32, %c0_i32_0 : i32, i32
  }
  func.func @transform_4(%arg0: i32) -> (i32, i32) {
    %c0_i32 = arith.constant 0 : i32
    %c0_i32_0 = arith.constant 0 : i32
    %c0_i32_1 = arith.constant 0 : i32
    return %c0_i32, %c0_i32_0 : i32, i32
  }
  func.func @transform_5(%arg0: i32) -> (i32, i32) {
    %c0_i32 = arith.constant 0 : i32
    %c0_i32_0 = arith.constant 0 : i32
    %c0_i32_1 = arith.constant 0 : i32
    return %c0_i32, %c0_i32_0 : i32, i32
  }
  func.func @transform_6(%arg0: i32) -> (i32, i32) {
    %c0_i32 = arith.constant 0 : i32
    %c0_i32_0 = arith.constant 0 : i32
    %c0_i32_1 = arith.constant 0 : i32
    return %c0_i32, %c0_i32_0 : i32, i32
  }
  func.func @transform_7(%arg0: i32) -> (i32, i32) {
    %c0_i32 = arith.constant 0 : i32
    %c0_i32_0 = arith.constant 0 : i32
    %c0_i32_1 = arith.constant 0 : i32
    return %c0_i32, %c0_i32_0 : i32, i32
  }
  func.func @transform_8(%arg0: i32) -> (i32, i32) {
    %c0_i32 = arith.constant 0 : i32
    %c0_i32_0 = arith.constant 0 : i32
    %c0_i32_1 = arith.constant 0 : i32
    return %c0_i32, %c0_i32_0 : i32, i32
  }
  func.func @transform_9(%arg0: i32) -> (i32, i32) {
    %c0_i32 = arith.constant 0 : i32
    %c0_i32_0 = arith.constant 0 : i32
    return %arg0, %c0_i32 : i32, i32
  }
}

</mosaic_0001>

<llo_original>
// kernel: tpu_custom_call.1
$region0: #{tpu_custom_call.1}
  #allocation0 [shape = 'u32[]', space=smem, size = 0x4, offset = 0x4, fixed_abs, tag = 'smem constant byte address 0x4 - core index']
  #allocation1 [shape = 'u32[72,128]{1,0:T(1,128)}', space=vmem, size = 0x9000, scoped, tag = 'internal scratch']
  %s0 = inlined_call_operand.vmem [shape: f32[208,32], index: 0, kind: input, shape index: {}]
  %s1 = inlined_call_operand.vmem [shape: f32[208,3], index: 1, kind: input, shape index: {}]
  %s2 = inlined_call_operand.vmem [shape: f32[32,33], index: 2, kind: input, shape index: {}]
  %s3 = inlined_call_operand.vmem [shape: f32[1,33], index: 3, kind: input, shape index: {}]
  %s4 = inlined_call_operand.vmem [shape: f32[32,16], index: 4, kind: input, shape index: {}]
  %s5 = inlined_call_operand.vmem [shape: f32[3,16], index: 5, kind: input, shape index: {}]
  %s6 = inlined_call_operand.vmem [shape: f32[1,16], index: 6, kind: input, shape index: {}]
  %s7 = inlined_call_operand.vmem [shape: f32[16,3], index: 7, kind: input, shape index: {}]
  %s8 = inlined_call_operand.vmem [shape: f32[1,3], index: 8, kind: input, shape index: {}]
  %s9 = inlined_call_operand.vmem [shape: f32[208,4], index: 9, kind: output, shape index: {}]
  %s10 = sld [smem:[#allocation0]]
  $region69: #{tpu_custom_call.1} parent=0
    _
  %s12 = ssub.s32 1, %s10
  %s13 = scalar_select 0, %s12, %s10
  loop: start=0, step=1, limit=4
  $region2: #{tpu_custom_call.1} parent=0 // loop_pre_header
    _
  $region3: #{tpu_custom_call.1} parent=0 // loop_header
    %s15 = sphi 0, %s19
    %p16 = scmp.ge.s32.totalorder %s15, 4
    %s25 = sphi 0, %s27
    %s28 = sphi 0, %s25
    %s29 = sphi 0, %s28
    %s45 = sphi 0, %s29
    %s51 = sphi 0, %s53
    %s54 = sphi 0, %s51
    %s55 = sphi 0, %s54
    %s71 = sphi 0, %s55
    %s75 = sphi 0, %s75
    %s77 = sphi 0, %s75
    %s78 = sphi 0, %s77
    %s92 = sphi 0, %s78
    %s96 = sphi 0, %s96
    %s98 = sphi 0, %s96
    %s99 = sphi 0, %s98
    %s113 = sphi 0, %s99
    %s117 = sphi 0, %s117
    %s119 = sphi 0, %s117
    %s120 = sphi 0, %s119
    %s134 = sphi 0, %s120
    %s138 = sphi 0, %s138
    %s140 = sphi 0, %s138
    %s141 = sphi 0, %s140
    %s155 = sphi 0, %s141
    %s159 = sphi 0, %s159
    %s161 = sphi 0, %s159
    %s162 = sphi 0, %s161
    %s176 = sphi 0, %s162
    %s180 = sphi 0, %s180
    %s182 = sphi 0, %s180
    %s183 = sphi 0, %s182
    %s197 = sphi 0, %s183
    %s201 = sphi 0, %s201
    %s203 = sphi 0, %s201
    %s204 = sphi 0, %s203
    %s218 = sphi 0, %s204
    %s224 = sphi 0, %s226
    %s227 = sphi 0, %s224
    %s228 = sphi 0, %s227
    %s244 = sphi 0, %s228
  $region4: #{tpu_custom_call.1} parent=0 // loop_header_branch
    %18 = sbr.rel (%p16) target = $region8
  $region5: #{tpu_custom_call.1} parent=0 // loop_body
    %s20 = ssub.s32 %s15, 1
    %s21 = ssub.s32 %s15, 2
    %s22 = sadd.s32 %s15, 1
    %s23 = ssub.s32 %s15, %s22
    %p24 = scmp.eq.s32.totalorder %s23, 0
    %s26 = sadd.s32 %s25, 1
    %s27 = scalar_select %p24, %s25, %s26
    %p30 = pneg %p24
    %p31 = scmp.eq.s32.totalorder %s15, 1
    %p32 = por %p30, %p31
    %p33 = scmp.ne.s32.totalorder %s25, %s28
    %p34 = scmp.eq.s32.totalorder %s15, 0
    %p35 = por %p33, %p34
    %p36 = scmp.ne.s32.totalorder %s25, %s28
    %p37 = scmp.eq.s32.totalorder %s20, 1
    %p38 = por %p36, %p37
    %p39 = scmp.ne.s32.totalorder %s28, %s29
    %p40 = scmp.eq.s32.totalorder %s20, 0
    %p41 = por %p39, %p40
    %p42 = scmp.ne.s32.totalorder %s28, %s29
    %p43 = scmp.eq.s32.totalorder %s21, 1
    %p44 = por %p42, %p43
    %p46 = scmp.ne.s32.totalorder %s29, %s45
    %p47 = scmp.eq.s32.totalorder %s21, 0
    %p48 = por %p46, %p47
    %s49 = ssub.s32 %s15, %s22
    %p50 = scmp.eq.s32.totalorder %s49, 0
    %s52 = sadd.s32 %s51, 1
    %s53 = scalar_select %p50, %s51, %s52
    %p56 = pneg %p50
    %p57 = scmp.eq.s32.totalorder %s15, 1
    %p58 = por %p56, %p57
    %p59 = scmp.ne.s32.totalorder %s51, %s54
    %p60 = scmp.eq.s32.totalorder %s15, 0
    %p61 = por %p59, %p60
    %p62 = scmp.ne.s32.totalorder %s51, %s54
    %p63 = scmp.eq.s32.totalorder %s20, 1
    %p64 = por %p62, %p63
    %p65 = scmp.ne.s32.totalorder %s54, %s55
    %p66 = scmp.eq.s32.totalorder %s20, 0
    %p67 = por %p65, %p66
    %p68 = scmp.ne.s32.totalorder %s54, %s55
    %p69 = scmp.eq.s32.totalorder %s21, 1
    %p70 = por %p68, %p69
    %p72 = scmp.ne.s32.totalorder %s55, %s71
    %p73 = scmp.eq.s32.totalorder %s21, 0
    %p74 = por %p72, %p73
    %s76 = sadd.s32 %s75, 1
    %p79 = scmp.eq.s32.totalorder %s15, 1
    %p80 = scmp.ne.s32.totalorder %s75, %s77
    %p81 = scmp.eq.s32.totalorder %s15, 0
    %p82 = por %p80, %p81
    %p83 = scmp.ne.s32.totalorder %s75, %s77
    %p84 = scmp.eq.s32.totalorder %s20, 1
    %p85 = por %p83, %p84
    %p86 = scmp.ne.s32.totalorder %s77, %s78
    %p87 = scmp.eq.s32.totalorder %s20, 0
    %p88 = por %p86, %p87
    %p89 = scmp.ne.s32.totalorder %s77, %s78
    %p90 = scmp.eq.s32.totalorder %s21, 1
    %p91 = por %p89, %p90
    %p93 = scmp.ne.s32.totalorder %s78, %s92
    %p94 = scmp.eq.s32.totalorder %s21, 0
    %p95 = por %p93, %p94
    %s97 = sadd.s32 %s96, 1
    %p100 = scmp.eq.s32.totalorder %s15, 1
    %p101 = scmp.ne.s32.totalorder %s96, %s98
    %p102 = scmp.eq.s32.totalorder %s15, 0
    %p103 = por %p101, %p102
    %p104 = scmp.ne.s32.totalorder %s96, %s98
    %p105 = scmp.eq.s32.totalorder %s20, 1
    %p106 = por %p104, %p105
    %p107 = scmp.ne.s32.totalorder %s98, %s99
    %p108 = scmp.eq.s32.totalorder %s20, 0
    %p109 = por %p107, %p108
    %p110 = scmp.ne.s32.totalorder %s98, %s99
    %p111 = scmp.eq.s32.totalorder %s21, 1
    %p112 = por %p110, %p111
    %p114 = scmp.ne.s32.totalorder %s99, %s113
    %p115 = scmp.eq.s32.totalorder %s21, 0
    %p116 = por %p114, %p115
    %s118 = sadd.s32 %s117, 1
    %p121 = scmp.eq.s32.totalorder %s15, 1
    %p122 = scmp.ne.s32.totalorder %s117, %s119
    %p123 = scmp.eq.s32.totalorder %s15, 0
    %p124 = por %p122, %p123
    %p125 = scmp.ne.s32.totalorder %s117, %s119
    %p126 = scmp.eq.s32.totalorder %s20, 1
    %p127 = por %p125, %p126
    %p128 = scmp.ne.s32.totalorder %s119, %s120
    %p129 = scmp.eq.s32.totalorder %s20, 0
    %p130 = por %p128, %p129
    %p131 = scmp.ne.s32.totalorder %s119, %s120
    %p132 = scmp.eq.s32.totalorder %s21, 1
    %p133 = por %p131, %p132
    %p135 = scmp.ne.s32.totalorder %s120, %s134
    %p136 = scmp.eq.s32.totalorder %s21, 0
    %p137 = por %p135, %p136
    %s139 = sadd.s32 %s138, 1
    %p142 = scmp.eq.s32.totalorder %s15, 1
    %p143 = scmp.ne.s32.totalorder %s138, %s140
    %p144 = scmp.eq.s32.totalorder %s15, 0
    %p145 = por %p143, %p144
    %p146 = scmp.ne.s32.totalorder %s138, %s140
    %p147 = scmp.eq.s32.totalorder %s20, 1
    %p148 = por %p146, %p147
    %p149 = scmp.ne.s32.totalorder %s140, %s141
    %p150 = scmp.eq.s32.totalorder %s20, 0
    %p151 = por %p149, %p150
    %p152 = scmp.ne.s32.totalorder %s140, %s141
    %p153 = scmp.eq.s32.totalorder %s21, 1
    %p154 = por %p152, %p153
    %p156 = scmp.ne.s32.totalorder %s141, %s155
    %p157 = scmp.eq.s32.totalorder %s21, 0
    %p158 = por %p156, %p157
    %s160 = sadd.s32 %s159, 1
    %p163 = scmp.eq.s32.totalorder %s15, 1
    %p164 = scmp.ne.s32.totalorder %s159, %s161
    %p165 = scmp.eq.s32.totalorder %s15, 0
    %p166 = por %p164, %p165
    %p167 = scmp.ne.s32.totalorder %s159, %s161
    %p168 = scmp.eq.s32.totalorder %s20, 1
    %p169 = por %p167, %p168
    %p170 = scmp.ne.s32.totalorder %s161, %s162
    %p171 = scmp.eq.s32.totalorder %s20, 0
    %p172 = por %p170, %p171
    %p173 = scmp.ne.s32.totalorder %s161, %s162
    %p174 = scmp.eq.s32.totalorder %s21, 1
    %p175 = por %p173, %p174
    %p177 = scmp.ne.s32.totalorder %s162, %s176
    %p178 = scmp.eq.s32.totalorder %s21, 0
    %p179 = por %p177, %p178
    %s181 = sadd.s32 %s180, 1
    %p184 = scmp.eq.s32.totalorder %s15, 1
    %p185 = scmp.ne.s32.totalorder %s180, %s182
    %p186 = scmp.eq.s32.totalorder %s15, 0
    %p187 = por %p185, %p186
    %p188 = scmp.ne.s32.totalorder %s180, %s182
    %p189 = scmp.eq.s32.totalorder %s20, 1
    %p190 = por %p188, %p189
    %p191 = scmp.ne.s32.totalorder %s182, %s183
    %p192 = scmp.eq.s32.totalorder %s20, 0
    %p193 = por %p191, %p192
    %p194 = scmp.ne.s32.totalorder %s182, %s183
    %p195 = scmp.eq.s32.totalorder %s21, 1
    %p196 = por %p194, %p195
    %p198 = scmp.ne.s32.totalorder %s183, %s197
    %p199 = scmp.eq.s32.totalorder %s21, 0
    %p200 = por %p198, %p199
    %s202 = sadd.s32 %s201, 1
    %p205 = scmp.eq.s32.totalorder %s15, 1
    %p206 = scmp.ne.s32.totalorder %s201, %s203
    %p207 = scmp.eq.s32.totalorder %s15, 0
    %p208 = por %p206, %p207
    %p209 = scmp.ne.s32.totalorder %s201, %s203
    %p210 = scmp.eq.s32.totalorder %s20, 1
    %p211 = por %p209, %p210
    %p212 = scmp.ne.s32.totalorder %s203, %s204
    %p213 = scmp.eq.s32.totalorder %s20, 0
    %p214 = por %p212, %p213
    %p215 = scmp.ne.s32.totalorder %s203, %s204
    %p216 = scmp.eq.s32.totalorder %s21, 1
    %p217 = por %p215, %p216
    %p219 = scmp.ne.s32.totalorder %s204, %s218
    %p220 = scmp.eq.s32.totalorder %s21, 0
    %p221 = por %p219, %p220
    %s222 = ssub.s32 %s15, %s22
    %p223 = scmp.eq.s32.totalorder %s222, 0
    %s225 = sadd.s32 %s224, 1
    %s226 = scalar_select %p223, %s224, %s225
    %p229 = pneg %p223
    %p230 = scmp.eq.s32.totalorder %s15, 1
    %p231 = por %p229, %p230
    %p232 = scmp.ne.s32.totalorder %s224, %s227
    %p233 = scmp.eq.s32.totalorder %s15, 0
    %p234 = por %p232, %p233
    %p235 = scmp.ne.s32.totalorder %s224, %s227
    %p236 = scmp.eq.s32.totalorder %s20, 1
    %p237 = por %p235, %p236
    %p238 = scmp.ne.s32.totalorder %s227, %s228
    %p239 = scmp.eq.s32.totalorder %s20, 0
    %p240 = por %p238, %p239
    %p241 = scmp.ne.s32.totalorder %s227, %s228
    %p242 = scmp.eq.s32.totalorder %s21, 1
    %p243 = por %p241, %p242
    %p245 = scmp.ne.s32.totalorder %s228, %s244
    %p246 = scmp.eq.s32.totalorder %s21, 0
    %p247 = por %p245, %p246
    %p248 = scmp.le.s32.totalorder 1, %s15
    %p249 = scmp.lt.s32.totalorder %s15, 3
    %p250 = pnand %p248, %p249
    %p251 = pneg %p250
    // Predicated region
    $region9: #{tpu_custom_call.1} parent=5 // pred_check
      _
    $region10: #{tpu_custom_call.1} parent=5 // pred_check_branch
      %253 = sbr.rel (%p250) target = $region12
    $region11: #{tpu_custom_call.1} parent=5 // pred_region
      %s254 = ssub.s32 %s15, 1
      // Predicated region
      $region13: #{tpu_custom_call.1} parent=11 // pred_check
        %p255 = pneg %p88
      $region14: #{tpu_custom_call.1} parent=11 // pred_check_branch
        %257 = sbr.rel (%p255) target = $region16
      $region15: #{tpu_custom_call.1} parent=11 // pred_region
        _
      $region16: #{tpu_custom_call.1} parent=11 // pred_fallthru
        _
      // Predicated region
      $region17: #{tpu_custom_call.1} parent=11 // pred_check
        %p258 = pneg %p109
      $region18: #{tpu_custom_call.1} parent=11 // pred_check_branch
        %260 = sbr.rel (%p258) target = $region20
      $region19: #{tpu_custom_call.1} parent=11 // pred_region
        _
      $region20: #{tpu_custom_call.1} parent=11 // pred_fallthru
        _
      // Predicated region
      $region21: #{tpu_custom_call.1} parent=11 // pred_check
        %p261 = pneg %p130
      $region22: #{tpu_custom_call.1} parent=11 // pred_check_branch
        %263 = sbr.rel (%p261) target = $region24
      $region23: #{tpu_custom_call.1} parent=11 // pred_region
        _
      $region24: #{tpu_custom_call.1} parent=11 // pred_fallthru
        _
      // Predicated region
      $region25: #{tpu_custom_call.1} parent=11 // pred_check
        %p264 = pneg %p151
      $region26: #{tpu_custom_call.1} parent=11 // pred_check_branch
        %266 = sbr.rel (%p264) target = $region28
      $region27: #{tpu_custom_call.1} parent=11 // pred_region
        _
      $region28: #{tpu_custom_call.1} parent=11 // pred_fallthru
        _
      // Predicated region
      $region29: #{tpu_custom_call.1} parent=11 // pred_check
        %p267 = pneg %p172
      $region30: #{tpu_custom_call.1} parent=11 // pred_check_branch
        %269 = sbr.rel (%p267) target = $region32
      $region31: #{tpu_custom_call.1} parent=11 // pred_region
        _
      $region32: #{tpu_custom_call.1} parent=11 // pred_fallthru
        _
      // Predicated region
      $region33: #{tpu_custom_call.1} parent=11 // pred_check
        %p270 = pneg %p193
      $region34: #{tpu_custom_call.1} parent=11 // pred_check_branch
        %272 = sbr.rel (%p270) target = $region36
      $region35: #{tpu_custom_call.1} parent=11 // pred_region
        _
      $region36: #{tpu_custom_call.1} parent=11 // pred_fallthru
        _
      // Predicated region
      $region37: #{tpu_custom_call.1} parent=11 // pred_check
        %p273 = pneg %p214
      $region38: #{tpu_custom_call.1} parent=11 // pred_check_branch
        %275 = sbr.rel (%p273) target = $region40
      $region39: #{tpu_custom_call.1} parent=11 // pred_region
        _
      $region40: #{tpu_custom_call.1} parent=11 // pred_fallthru
        _
    $region12: #{tpu_custom_call.1} parent=5 // pred_fallthru
      _
    %p276 = scmp.lt.s32.totalorder %s15, 2
    // Predicated region
    $region41: #{tpu_custom_call.1} parent=5 // pred_check
      %p277 = pneg %p276
    $region42: #{tpu_custom_call.1} parent=5 // pred_check_branch
      %279 = sbr.rel (%p277) target = $region44
    $region43: #{tpu_custom_call.1} parent=5 // pred_region
      // Predicated region
      $region45: #{tpu_custom_call.1} parent=43 // pred_check
        %p280 = pneg %p35
      $region46: #{tpu_custom_call.1} parent=43 // pred_check_branch
        %282 = sbr.rel (%p280) target = $region48
      $region47: #{tpu_custom_call.1} parent=43 // pred_region
        %s283 = smul.u32 13, %s15
        %p284 = scmp.lt.s32.totalorder %s283, 25
        %s285 = scalar_select %p284, %s283, 25
        %s286 = smul.addr %s285, 8
        %s287 = scalar_lea.vmem %s0, %s286
        %s288 = smul.u32 13, %s15
      $region48: #{tpu_custom_call.1} parent=43 // pred_fallthru
        _
      // Predicated region
      $region49: #{tpu_custom_call.1} parent=43 // pred_check
        %p289 = pneg %p61
      $region50: #{tpu_custom_call.1} parent=43 // pred_check_branch
        %291 = sbr.rel (%p289) target = $region52
      $region51: #{tpu_custom_call.1} parent=43 // pred_region
        %s292 = smul.u32 13, %s15
        %p293 = scmp.lt.s32.totalorder %s292, 25
        %s294 = scalar_select %p293, %s292, 25
        %s295 = smul.addr %s294, 8
        %s296 = scalar_lea.vmem %s1, %s295
        %s297 = smul.u32 13, %s15
      $region52: #{tpu_custom_call.1} parent=43 // pred_fallthru
        _
    $region44: #{tpu_custom_call.1} parent=5 // pred_fallthru
      _
    %p298 = scmp.le.s32.totalorder 1, %s15
    %p299 = scmp.lt.s32.totalorder %s15, 3
    %p300 = pnand %p298, %p299
    %p301 = pneg %p300
    // Predicated region
    $region53: #{tpu_custom_call.1} parent=5 // pred_check
      _
    $region54: #{tpu_custom_call.1} parent=5 // pred_check_branch
      %303 = sbr.rel (%p300) target = $region56
    $region55: #{tpu_custom_call.1} parent=5 // pred_region
      %s304 = ssub.s32 %s15, 1
      %s305 = smul.u32 13, %s20
      %p306 = scmp.lt.s32.totalorder %s305, 25
      %s307 = scalar_select %p306, %s305, 25
      %s308 = smul.addr %s307, 8
      %s309 = scalar_lea.vmem %s0, %s308
      %p310 = pneg %p41
      %p311 = pneg %p38
      %s312 = smul.u32 13, %s20
      %p313 = scmp.lt.s32.totalorder %s312, 25
      %s314 = scalar_select %p313, %s312, 25
      %s315 = smul.addr %s314, 8
      %s316 = scalar_lea.vmem %s1, %s315
      %p317 = pneg %p67
      %p318 = pneg %p64
      %p319 = pneg %p88
      %p320 = pneg %p85
      %p321 = pneg %p109
      %p322 = pneg %p106
      %p323 = pneg %p130
      %p324 = pneg %p127
      %p325 = pneg %p151
      %p326 = pneg %p148
      %p327 = pneg %p172
      %p328 = pneg %p169
      %p329 = pneg %p193
      %p330 = pneg %p190
      %p331 = pneg %p214
      %p332 = pneg %p211
      %p333 = pneg %p240
      %p334 = pneg %p237
      %s335 = smul.u32 13, %s20
      %p336 = scmp.lt.s32.totalorder %s335, 25
      %s337 = scalar_select %p336, %s335, 25
      %s338 = smul.addr %s337, 8
      %s339 = scalar_lea.vmem %s9, %s338
      %s340 = smul.u32 13, %s20
      %p341 = scmp.lt.s32.totalorder %s340, 25
      %s342 = scalar_select %p341, %s340, 25
      %s343 = smul.addr %s342, 8
      %s344 = scalar_lea.vmem %s0, %s343
      %s345 = smul.u32 13, %s20
      %s346 = smul.u32 13, %s20
      %p347 = scmp.lt.s32.totalorder %s346, 25
      %s348 = scalar_select %p347, %s346, 25
      %s349 = smul.addr %s348, 8
      %s350 = scalar_lea.vmem %s1, %s349
      %s351 = smul.u32 13, %s20
      %s352 = smul.u32 13, %s20
      %p353 = scmp.lt.s32.totalorder %s352, 25
      %s354 = scalar_select %p353, %s352, 25
      %s355 = smul.addr %s354, 8
      %s356 = scalar_lea.vmem %s9, %s355
      %s357 = smul.u32 13, %s20
      %v358 = vld [vmem:[%s344] sm:$0xff]
      %v359 = vld [vmem:[%s344 + $0x8] sm:$0xff]
      %v360 = vld [vmem:[%s344 + $0x10] sm:$0xff]
      %v361 = vld [vmem:[%s344 + $0x18] sm:$0xff]
      %v362 = vld [vmem:[%s344 + $0x20] sm:$0xff]
      %v363 = vld [vmem:[%s344 + $0x28] sm:$0xff]
      %v364 = vld [vmem:[%s344 + $0x30] sm:$0xff]
      %v365 = vld [vmem:[%s344 + $0x38] sm:$0xff]
      %v366 = vld [vmem:[%s344 + $0x40] sm:$0xff]
      %v367 = vld [vmem:[%s344 + $0x48] sm:$0xff]
      %v368 = vld [vmem:[%s344 + $0x50] sm:$0xff]
      %v369 = vld [vmem:[%s344 + $0x58] sm:$0xff]
      %v370 = vld [vmem:[%s344 + $0x60] sm:$0xff]
      %v371 = vld [vmem:[%s350] sm:$0xff]
      %v372 = vld [vmem:[%s350 + $0x8] sm:$0xff]
      %v373 = vld [vmem:[%s350 + $0x10] sm:$0xff]
      %v374 = vld [vmem:[%s350 + $0x18] sm:$0xff]
      %v375 = vld [vmem:[%s350 + $0x20] sm:$0xff]
      %v376 = vld [vmem:[%s350 + $0x28] sm:$0xff]
      %v377 = vld [vmem:[%s350 + $0x30] sm:$0xff]
      %v378 = vld [vmem:[%s350 + $0x38] sm:$0xff]
      %v379 = vld [vmem:[%s350 + $0x40] sm:$0xff]
      %v380 = vld [vmem:[%s350 + $0x48] sm:$0xff]
      %v381 = vld [vmem:[%s350 + $0x50] sm:$0xff]
      %v382 = vld [vmem:[%s350 + $0x58] sm:$0xff]
      %v383 = vld [vmem:[%s350 + $0x60] sm:$0xff]
      %v384 = vld [vmem:[%s2] sm:$0xff]
      %v385 = vld [vmem:[%s2 + $0x8] sm:$0xff]
      %v386 = vld [vmem:[%s2 + $0x10] sm:$0xff]
      %v387 = vld [vmem:[%s2 + $0x18] sm:$0xff]
      %v388 = vld [vmem:[%s3] sm:$0x1]
      %v390 = vperm.slane %v388, 0
      %vm392 = vcmask 261120
      %v394 = vsel %vm392, %v358, 0
      %v397 = vsel %vm392, %v359, 0
      %v400 = vsel %vm392, %v360, 0
      %v403 = vsel %vm392, %v361, 0
      %v406 = vsel %vm392, %v362, 0
      %v409 = vsel %vm392, %v363, 0
      %v412 = vsel %vm392, %v364, 0
      %v415 = vsel %vm392, %v365, 0
      %v418 = vsel %vm392, %v366, 0
      %v421 = vsel %vm392, %v367, 0
      %v424 = vsel %vm392, %v368, 0
      %v427 = vsel %vm392, %v369, 0
      %v430 = vsel %vm392, %v370, 0
      %432 = vmatpush.msra.mxu0 0.0
      %433 = vmatpush.msra.mxu0 0.0
      %434 = vmatpush.msra.mxu0 0.0
      %435 = vmatpush.msra.mxu0 0.0
      %436 = vmatpush.msra.mxu0 0.0
      %437 = vmatpush.msra.mxu0 0.0
      %438 = vmatpush.msra.mxu0 0.0
      %439 = vmatpush.msra.mxu0 0.0
      %440 = vmatpush.msra.mxu0 0.0
      %441 = vmatpush.msra.mxu0 0.0
      %442 = vmatpush.msra.mxu0 0.0
      %443 = vmatpush.msra.mxu0 0.0
      %444 = vmatpush.msra.mxu0 %v387
      %445 = vmatpush.msra.mxu0 %v386
      %446 = vmatpush.msra.mxu0 %v385
      %447 = vmatpush.msra.mxu0 %v384
      %448 = vmatmul.f32.gmra.mxu0 %v394
      %v449 = vpop.f32.mrf.mxu0
      %v450 = vadd.f32 %v390, %v449
      %451 = vmatmul.f32.gmra.mxu0 %v397
      %v452 = vpop.f32.mrf.mxu0
      %v453 = vadd.f32 %v390, %v452
      %454 = vmatmul.f32.gmra.mxu0 %v400
      %v455 = vpop.f32.mrf.mxu0
      %v456 = vadd.f32 %v390, %v455
      %457 = vmatmul.f32.gmra.mxu0 %v403
      %v458 = vpop.f32.mrf.mxu0
      %v459 = vadd.f32 %v390, %v458
      %460 = vmatmul.f32.gmra.mxu0 %v406
      %v461 = vpop.f32.mrf.mxu0
      %v462 = vadd.f32 %v390, %v461
      %463 = vmatmul.f32.gmra.mxu0 %v409
      %v464 = vpop.f32.mrf.mxu0
      %v465 = vadd.f32 %v390, %v464
      %466 = vmatmul.f32.gmra.mxu0 %v412
      %v467 = vpop.f32.mrf.mxu0
      %v468 = vadd.f32 %v390, %v467
      %469 = vmatmul.f32.gmra.mxu0 %v415
      %v470 = vpop.f32.mrf.mxu0
      %v471 = vadd.f32 %v390, %v470
      %472 = vmatmul.f32.gmra.mxu0 %v418
      %v473 = vpop.f32.mrf.mxu0
      %v474 = vadd.f32 %v390, %v473
      %475 = vmatmul.f32.gmra.mxu0 %v421
      %v476 = vpop.f32.mrf.mxu0
      %v477 = vadd.f32 %v390, %v476
      %478 = vmatmul.f32.gmra.mxu0 %v424
      %v479 = vpop.f32.mrf.mxu0
      %v480 = vadd.f32 %v390, %v479
      %481 = vmatmul.f32.gmra.mxu0 %v427
      %v482 = vpop.f32.mrf.mxu0
      %v483 = vadd.f32 %v390, %v482
      %484 = vmatmul.f32.gmra.mxu0 %v430
      %v485 = vpop.f32.mrf.mxu0
      %v486 = vadd.f32 %v390, %v485
      %487 = vdwg.mxu0
      %v488 = vmax.f32 %v450, 0.0
      %v489 = vmax.f32 %v453, 0.0
      %v490 = vmax.f32 %v456, 0.0
      %v491 = vmax.f32 %v459, 0.0
      %v492 = vmax.f32 %v462, 0.0
      %v493 = vmax.f32 %v465, 0.0
      %v494 = vmax.f32 %v468, 0.0
      %v495 = vmax.f32 %v471, 0.0
      %v496 = vmax.f32 %v474, 0.0
      %v497 = vmax.f32 %v477, 0.0
      %v498 = vmax.f32 %v480, 0.0
      %v499 = vmax.f32 %v483, 0.0
      %v500 = vmax.f32 %v486, 0.0
      %v501 = vld [vmem:[%s4] sm:$0xff]
      %v502 = vld [vmem:[%s4 + $0x8] sm:$0xff]
      %v503 = vld [vmem:[%s4 + $0x10] sm:$0xff]
      %v504 = vld [vmem:[%s4 + $0x18] sm:$0xff]
      %v505 = vld [vmem:[%s5] sm:$0x7]
      %vm506 = vcmask 23552
      %v508 = vsel %vm506, %v371, 0
      %v511 = vsel %vm506, %v372, 0
      %v514 = vsel %vm506, %v373, 0
      %v517 = vsel %vm506, %v374, 0
      %v520 = vsel %vm506, %v375, 0
      %v523 = vsel %vm506, %v376, 0
      %v526 = vsel %vm506, %v377, 0
      %v529 = vsel %vm506, %v378, 0
      %v532 = vsel %vm506, %v379, 0
      %v535 = vsel %vm506, %v380, 0
      %v538 = vsel %vm506, %v381, 0
      %v541 = vsel %vm506, %v382, 0
      %v544 = vsel %vm506, %v383, 0
      %vm546 = vcmask 1042432
      %v548 = vsel %vm546, %v505, 0
      %550 = vmatpush.msra.mxu0 0.0
      %551 = vmatpush.msra.mxu0 0.0
      %552 = vmatpush.msra.mxu0 0.0
      %553 = vmatpush.msra.mxu0 0.0
      %554 = vmatpush.msra.mxu0 0.0
      %555 = vmatpush.msra.mxu0 0.0
      %556 = vmatpush.msra.mxu0 0.0
      %557 = vmatpush.msra.mxu0 0.0
      %558 = vmatpush.msra.mxu0 0.0
      %559 = vmatpush.msra.mxu0 0.0
      %560 = vmatpush.msra.mxu0 0.0
      %561 = vmatpush.msra.mxu0 0.0
      %562 = vmatpush.msra.mxu0 0.0
      %563 = vmatpush.msra.mxu0 0.0
      %564 = vmatpush.msra.mxu0 0.0
      %565 = vmatpush.msra.mxu0 %v548
      %566 = vmatmul.f32.gmra.mxu0 %v508
      %v567 = vpop.f32.mrf.mxu0
      %v568 = vadd.f32 0.0, %v567
      %569 = vmatmul.f32.gmra.mxu0 %v511
      %v570 = vpop.f32.mrf.mxu0
      %v571 = vadd.f32 0.0, %v570
      %572 = vmatmul.f32.gmra.mxu0 %v514
      %v573 = vpop.f32.mrf.mxu0
      %v574 = vadd.f32 0.0, %v573
      %575 = vmatmul.f32.gmra.mxu0 %v517
      %v576 = vpop.f32.mrf.mxu0
      %v577 = vadd.f32 0.0, %v576
      %578 = vmatmul.f32.gmra.mxu0 %v520
      %v579 = vpop.f32.mrf.mxu0
      %v580 = vadd.f32 0.0, %v579
      %581 = vmatmul.f32.gmra.mxu0 %v523
      %v582 = vpop.f32.mrf.mxu0
      %v583 = vadd.f32 0.0, %v582
      %584 = vmatmul.f32.gmra.mxu0 %v526
      %v585 = vpop.f32.mrf.mxu0
      %v586 = vadd.f32 0.0, %v585
      %587 = vmatmul.f32.gmra.mxu0 %v529
      %v588 = vpop.f32.mrf.mxu0
      %v589 = vadd.f32 0.0, %v588
      %590 = vmatmul.f32.gmra.mxu0 %v532
      %v591 = vpop.f32.mrf.mxu0
      %v592 = vadd.f32 0.0, %v591
      %593 = vmatmul.f32.gmra.mxu0 %v535
      %v594 = vpop.f32.mrf.mxu0
      %v595 = vadd.f32 0.0, %v594
      %596 = vmatmul.f32.gmra.mxu0 %v538
      %v597 = vpop.f32.mrf.mxu0
      %v598 = vadd.f32 0.0, %v597
      %599 = vmatmul.f32.gmra.mxu0 %v541
      %v600 = vpop.f32.mrf.mxu0
      %v601 = vadd.f32 0.0, %v600
      %602 = vmatmul.f32.gmra.mxu0 %v544
      %v603 = vpop.f32.mrf.mxu0
      %v604 = vadd.f32 0.0, %v603
      %605 = vdwg.mxu0
      %v607 = vsel %vm392, %v450, 0
      %v610 = vsel %vm392, %v453, 0
      %v613 = vsel %vm392, %v456, 0
      %v616 = vsel %vm392, %v459, 0
      %v619 = vsel %vm392, %v462, 0
      %v622 = vsel %vm392, %v465, 0
      %v625 = vsel %vm392, %v468, 0
      %v628 = vsel %vm392, %v471, 0
      %v631 = vsel %vm392, %v474, 0
      %v634 = vsel %vm392, %v477, 0
      %v637 = vsel %vm392, %v480, 0
      %v640 = vsel %vm392, %v483, 0
      %v643 = vsel %vm392, %v486, 0
      %645 = vmatpush.msra.mxu0 0.0
      %646 = vmatpush.msra.mxu0 0.0
      %647 = vmatpush.msra.mxu0 0.0
      %648 = vmatpush.msra.mxu0 0.0
      %649 = vmatpush.msra.mxu0 0.0
      %650 = vmatpush.msra.mxu0 0.0
      %651 = vmatpush.msra.mxu0 0.0
      %652 = vmatpush.msra.mxu0 0.0
      %653 = vmatpush.msra.mxu0 0.0
      %654 = vmatpush.msra.mxu0 0.0
      %655 = vmatpush.msra.mxu0 0.0
      %656 = vmatpush.msra.mxu0 0.0
      %657 = vmatpush.msra.mxu0 %v504
      %658 = vmatpush.msra.mxu0 %v503
      %659 = vmatpush.msra.mxu0 %v502
      %660 = vmatpush.msra.mxu0 %v501
      %661 = vmatmul.f32.gmra.mxu0 %v607
      %v662 = vpop.f32.mrf.mxu0
      %v663 = vadd.f32 %v568, %v662
      %664 = vmatmul.f32.gmra.mxu0 %v610
      %v665 = vpop.f32.mrf.mxu0
      %v666 = vadd.f32 %v571, %v665
      %667 = vmatmul.f32.gmra.mxu0 %v613
      %v668 = vpop.f32.mrf.mxu0
      %v669 = vadd.f32 %v574, %v668
      %670 = vmatmul.f32.gmra.mxu0 %v616
      %v671 = vpop.f32.mrf.mxu0
      %v672 = vadd.f32 %v577, %v671
      %673 = vmatmul.f32.gmra.mxu0 %v619
      %v674 = vpop.f32.mrf.mxu0
      %v675 = vadd.f32 %v580, %v674
      %676 = vmatmul.f32.gmra.mxu0 %v622
      %v677 = vpop.f32.mrf.mxu0
      %v678 = vadd.f32 %v583, %v677
      %679 = vmatmul.f32.gmra.mxu0 %v625
      %v680 = vpop.f32.mrf.mxu0
      %v681 = vadd.f32 %v586, %v680
      %682 = vmatmul.f32.gmra.mxu0 %v628
      %v683 = vpop.f32.mrf.mxu0
      %v684 = vadd.f32 %v589, %v683
      %685 = vmatmul.f32.gmra.mxu0 %v631
      %v686 = vpop.f32.mrf.mxu0
      %v687 = vadd.f32 %v592, %v686
      %688 = vmatmul.f32.gmra.mxu0 %v634
      %v689 = vpop.f32.mrf.mxu0
      %v690 = vadd.f32 %v595, %v689
      %691 = vmatmul.f32.gmra.mxu0 %v637
      %v692 = vpop.f32.mrf.mxu0
      %v693 = vadd.f32 %v598, %v692
      %694 = vmatmul.f32.gmra.mxu0 %v640
      %v695 = vpop.f32.mrf.mxu0
      %v696 = vadd.f32 %v601, %v695
      %697 = vmatmul.f32.gmra.mxu0 %v643
      %v698 = vpop.f32.mrf.mxu0
      %v699 = vadd.f32 %v604, %v698
      %700 = vdwg.mxu0
      %v701 = vld [vmem:[%s6] sm:$0x1]
      %v703 = vperm.slane %v701, 0
      %v705 = vadd.f32 %v663, %v703
      %v706 = vadd.f32 %v666, %v703
      %v707 = vadd.f32 %v669, %v703
      %v708 = vadd.f32 %v672, %v703
      %v709 = vadd.f32 %v675, %v703
      %v710 = vadd.f32 %v678, %v703
      %v711 = vadd.f32 %v681, %v703
      %v712 = vadd.f32 %v684, %v703
      %v713 = vadd.f32 %v687, %v703
      %v714 = vadd.f32 %v690, %v703
      %v715 = vadd.f32 %v693, %v703
      %v716 = vadd.f32 %v696, %v703
      %v717 = vadd.f32 %v699, %v703
      %v718 = vmax.f32 %v705, 0.0
      %v719 = vmax.f32 %v706, 0.0
      %v720 = vmax.f32 %v707, 0.0
      %v721 = vmax.f32 %v708, 0.0
      %v722 = vmax.f32 %v709, 0.0
      %v723 = vmax.f32 %v710, 0.0
      %v724 = vmax.f32 %v711, 0.0
      %v725 = vmax.f32 %v712, 0.0
      %v726 = vmax.f32 %v713, 0.0
      %v727 = vmax.f32 %v714, 0.0
      %v728 = vmax.f32 %v715, 0.0
      %v729 = vmax.f32 %v716, 0.0
      %v730 = vmax.f32 %v717, 0.0
      %v731 = vld [vmem:[%s7] sm:$0xff]
      %v732 = vld [vmem:[%s7 + $0x8] sm:$0xff]
      %v733 = vld [vmem:[%s8] sm:$0x1]
      %v735 = vperm.slane %v733, 0
      %vm737 = vcmask 130048
      %v739 = vsel %vm737, %v718, 0
      %v742 = vsel %vm737, %v719, 0
      %v745 = vsel %vm737, %v720, 0
      %v748 = vsel %vm737, %v721, 0
      %v751 = vsel %vm737, %v722, 0
      %v754 = vsel %vm737, %v723, 0
      %v757 = vsel %vm737, %v724, 0
      %v760 = vsel %vm737, %v725, 0
      %v763 = vsel %vm737, %v726, 0
      %v766 = vsel %vm737, %v727, 0
      %v769 = vsel %vm737, %v728, 0
      %v772 = vsel %vm737, %v729, 0
      %v775 = vsel %vm737, %v730, 0
      %777 = vmatpush.msra.mxu0 0.0
      %778 = vmatpush.msra.mxu0 0.0
      %779 = vmatpush.msra.mxu0 0.0
      %780 = vmatpush.msra.mxu0 0.0
      %781 = vmatpush.msra.mxu0 0.0
      %782 = vmatpush.msra.mxu0 0.0
      %783 = vmatpush.msra.mxu0 0.0
      %784 = vmatpush.msra.mxu0 0.0
      %785 = vmatpush.msra.mxu0 0.0
      %786 = vmatpush.msra.mxu0 0.0
      %787 = vmatpush.msra.mxu0 0.0
      %788 = vmatpush.msra.mxu0 0.0
      %789 = vmatpush.msra.mxu0 0.0
      %790 = vmatpush.msra.mxu0 0.0
      %791 = vmatpush.msra.mxu0 %v732
      %792 = vmatpush.msra.mxu0 %v731
      %793 = vmatmul.f32.gmra.mxu0 %v739
      %v794 = vpop.f32.mrf.mxu0
      %v795 = vadd.f32 %v735, %v794
      %796 = vmatmul.f32.gmra.mxu0 %v742
      %v797 = vpop.f32.mrf.mxu0
      %v798 = vadd.f32 %v735, %v797
      %799 = vmatmul.f32.gmra.mxu0 %v745
      %v800 = vpop.f32.mrf.mxu0
      %v801 = vadd.f32 %v735, %v800
      %802 = vmatmul.f32.gmra.mxu0 %v748
      %v803 = vpop.f32.mrf.mxu0
      %v804 = vadd.f32 %v735, %v803
      %805 = vmatmul.f32.gmra.mxu0 %v751
      %v806 = vpop.f32.mrf.mxu0
      %v807 = vadd.f32 %v735, %v806
      %808 = vmatmul.f32.gmra.mxu0 %v754
      %v809 = vpop.f32.mrf.mxu0
      %v810 = vadd.f32 %v735, %v809
      %811 = vmatmul.f32.gmra.mxu0 %v757
      %v812 = vpop.f32.mrf.mxu0
      %v813 = vadd.f32 %v735, %v812
      %814 = vmatmul.f32.gmra.mxu0 %v760
      %v815 = vpop.f32.mrf.mxu0
      %v816 = vadd.f32 %v735, %v815
      %817 = vmatmul.f32.gmra.mxu0 %v763
      %v818 = vpop.f32.mrf.mxu0
      %v819 = vadd.f32 %v735, %v818
      %820 = vmatmul.f32.gmra.mxu0 %v766
      %v821 = vpop.f32.mrf.mxu0
      %v822 = vadd.f32 %v735, %v821
      %823 = vmatmul.f32.gmra.mxu0 %v769
      %v824 = vpop.f32.mrf.mxu0
      %v825 = vadd.f32 %v735, %v824
      %826 = vmatmul.f32.gmra.mxu0 %v772
      %v827 = vpop.f32.mrf.mxu0
      %v828 = vadd.f32 %v735, %v827
      %829 = vmatmul.f32.gmra.mxu0 %v775
      %v830 = vpop.f32.mrf.mxu0
      %v831 = vadd.f32 %v735, %v830
      %832 = vdwg.mxu0
      %v833 = vxor.u32 %v795, 2147483648
      %v834 = vxor.u32 %v798, 2147483648
      %v835 = vxor.u32 %v801, 2147483648
      %v836 = vxor.u32 %v804, 2147483648
      %v837 = vxor.u32 %v807, 2147483648
      %v838 = vxor.u32 %v810, 2147483648
      %v839 = vxor.u32 %v813, 2147483648
      %v840 = vxor.u32 %v816, 2147483648
      %v841 = vxor.u32 %v819, 2147483648
      %v842 = vxor.u32 %v822, 2147483648
      %v843 = vxor.u32 %v825, 2147483648
      %v844 = vxor.u32 %v828, 2147483648
      %v845 = vxor.u32 %v831, 2147483648
      %v846 = vmul.f32 %v833, 1.442695
      %v847 = vpow.pop %v846
      %v848 = vmul.f32 %v834, 1.442695
      %v849 = vpow.pop %v848
      %v850 = vmul.f32 %v835, 1.442695
      %v851 = vpow.pop %v850
      %v852 = vmul.f32 %v836, 1.442695
      %v853 = vpow.pop %v852
      %v854 = vmul.f32 %v837, 1.442695
      %v855 = vpow.pop %v854
      %v856 = vmul.f32 %v838, 1.442695
      %v857 = vpow.pop %v856
      %v858 = vmul.f32 %v839, 1.442695
      %v859 = vpow.pop %v858
      %v860 = vmul.f32 %v840, 1.442695
      %v861 = vpow.pop %v860
      %v862 = vmul.f32 %v841, 1.442695
      %v863 = vpow.pop %v862
      %v864 = vmul.f32 %v842, 1.442695
      %v865 = vpow.pop %v864
      %v866 = vmul.f32 %v843, 1.442695
      %v867 = vpow.pop %v866
      %v868 = vmul.f32 %v844, 1.442695
      %v869 = vpow.pop %v868
      %v870 = vmul.f32 %v845, 1.442695
      %v871 = vpow.pop %v870
      %v872 = vadd.f32 %v847, 1.0
      %v873 = vadd.f32 %v849, 1.0
      %v874 = vadd.f32 %v851, 1.0
      %v875 = vadd.f32 %v853, 1.0
      %v876 = vadd.f32 %v855, 1.0
      %v877 = vadd.f32 %v857, 1.0
      %v878 = vadd.f32 %v859, 1.0
      %v879 = vadd.f32 %v861, 1.0
      %v880 = vadd.f32 %v863, 1.0
      %v881 = vadd.f32 %v865, 1.0
      %v882 = vadd.f32 %v867, 1.0
      %v883 = vadd.f32 %v869, 1.0
      %v884 = vadd.f32 %v871, 1.0
      %v885 = vrcp.pop %v872
      %v886 = vmul.f32 %v872, %v885
      %v887 = vsub.f32 1.0, %v886
      %v888 = vmul.f32 %v885, %v887
      %v889 = vadd.f32 %v885, %v888
      %vm890 = vweird.f32 %v872
      %vm891 = vweird.f32 %v885
      %vm892 = vmor %vm890, %vm891
      %v893 = vsel %vm892, %v885, %v889
      %v894 = vand.u32 2147483647, %v872
      %vm895 = vcmp.eq.f32.partialorder %v894, 8.507059e+37
      %v896 = vand.u32 %v872, 2147483648
      %v897 = vor.u32 1.1754944e-38, %v896
      %v898 = vsel %vm895, %v897, %v893
      %v899 = vmul.f32 1.0, %v898
      %v900 = vrcp.pop %v873
      %v901 = vmul.f32 %v873, %v900
      %v902 = vsub.f32 1.0, %v901
      %v903 = vmul.f32 %v900, %v902
      %v904 = vadd.f32 %v900, %v903
      %vm905 = vweird.f32 %v873
      %vm906 = vweird.f32 %v900
      %vm907 = vmor %vm905, %vm906
      %v908 = vsel %vm907, %v900, %v904
      %v909 = vand.u32 2147483647, %v873
      %vm910 = vcmp.eq.f32.partialorder %v909, 8.507059e+37
      %v911 = vand.u32 %v873, 2147483648
      %v912 = vor.u32 1.1754944e-38, %v911
      %v913 = vsel %vm910, %v912, %v908
      %v914 = vmul.f32 1.0, %v913
      %v915 = vrcp.pop %v874
      %v916 = vmul.f32 %v874, %v915
      %v917 = vsub.f32 1.0, %v916
      %v918 = vmul.f32 %v915, %v917
      %v919 = vadd.f32 %v915, %v918
      %vm920 = vweird.f32 %v874
      %vm921 = vweird.f32 %v915
      %vm922 = vmor %vm920, %vm921
      %v923 = vsel %vm922, %v915, %v919
      %v924 = vand.u32 2147483647, %v874
      %vm925 = vcmp.eq.f32.partialorder %v924, 8.507059e+37
      %v926 = vand.u32 %v874, 2147483648
      %v927 = vor.u32 1.1754944e-38, %v926
      %v928 = vsel %vm925, %v927, %v923
      %v929 = vmul.f32 1.0, %v928
      %v930 = vrcp.pop %v875
      %v931 = vmul.f32 %v875, %v930
      %v932 = vsub.f32 1.0, %v931
      %v933 = vmul.f32 %v930, %v932
      %v934 = vadd.f32 %v930, %v933
      %vm935 = vweird.f32 %v875
      %vm936 = vweird.f32 %v930
      %vm937 = vmor %vm935, %vm936
      %v938 = vsel %vm937, %v930, %v934
      %v939 = vand.u32 2147483647, %v875
      %vm940 = vcmp.eq.f32.partialorder %v939, 8.507059e+37
      %v941 = vand.u32 %v875, 2147483648
      %v942 = vor.u32 1.1754944e-38, %v941
      %v943 = vsel %vm940, %v942, %v938
      %v944 = vmul.f32 1.0, %v943
      %v945 = vrcp.pop %v876
      %v946 = vmul.f32 %v876, %v945
      %v947 = vsub.f32 1.0, %v946
      %v948 = vmul.f32 %v945, %v947
      %v949 = vadd.f32 %v945, %v948
      %vm950 = vweird.f32 %v876
      %vm951 = vweird.f32 %v945
      %vm952 = vmor %vm950, %vm951
      %v953 = vsel %vm952, %v945, %v949
      %v954 = vand.u32 2147483647, %v876
      %vm955 = vcmp.eq.f32.partialorder %v954, 8.507059e+37
      %v956 = vand.u32 %v876, 2147483648
      %v957 = vor.u32 1.1754944e-38, %v956
      %v958 = vsel %vm955, %v957, %v953
      %v959 = vmul.f32 1.0, %v958
      %v960 = vrcp.pop %v877
      %v961 = vmul.f32 %v877, %v960
      %v962 = vsub.f32 1.0, %v961
      %v963 = vmul.f32 %v960, %v962
      %v964 = vadd.f32 %v960, %v963
      %vm965 = vweird.f32 %v877
      %vm966 = vweird.f32 %v960
      %vm967 = vmor %vm965, %vm966
      %v968 = vsel %vm967, %v960, %v964
      %v969 = vand.u32 2147483647, %v877
      %vm970 = vcmp.eq.f32.partialorder %v969, 8.507059e+37
      %v971 = vand.u32 %v877, 2147483648
      %v972 = vor.u32 1.1754944e-38, %v971
      %v973 = vsel %vm970, %v972, %v968
      %v974 = vmul.f32 1.0, %v973
      %v975 = vrcp.pop %v878
      %v976 = vmul.f32 %v878, %v975
      %v977 = vsub.f32 1.0, %v976
      %v978 = vmul.f32 %v975, %v977
      %v979 = vadd.f32 %v975, %v978
      %vm980 = vweird.f32 %v878
      %vm981 = vweird.f32 %v975
      %vm982 = vmor %vm980, %vm981
      %v983 = vsel %vm982, %v975, %v979
      %v984 = vand.u32 2147483647, %v878
      %vm985 = vcmp.eq.f32.partialorder %v984, 8.507059e+37
      %v986 = vand.u32 %v878, 2147483648
      %v987 = vor.u32 1.1754944e-38, %v986
      %v988 = vsel %vm985, %v987, %v983
      %v989 = vmul.f32 1.0, %v988
      %v990 = vrcp.pop %v879
      %v991 = vmul.f32 %v879, %v990
      %v992 = vsub.f32 1.0, %v991
      %v993 = vmul.f32 %v990, %v992
      %v994 = vadd.f32 %v990, %v993
      %vm995 = vweird.f32 %v879
      %vm996 = vweird.f32 %v990
      %vm997 = vmor %vm995, %vm996
      %v998 = vsel %vm997, %v990, %v994
      %v999 = vand.u32 2147483647, %v879
      %vm1000 = vcmp.eq.f32.partialorder %v999, 8.507059e+37
      %v1001 = vand.u32 %v879, 2147483648
      %v1002 = vor.u32 1.1754944e-38, %v1001
      %v1003 = vsel %vm1000, %v1002, %v998
      %v1004 = vmul.f32 1.0, %v1003
      %v1005 = vrcp.pop %v880
      %v1006 = vmul.f32 %v880, %v1005
      %v1007 = vsub.f32 1.0, %v1006
      %v1008 = vmul.f32 %v1005, %v1007
      %v1009 = vadd.f32 %v1005, %v1008
      %vm1010 = vweird.f32 %v880
      %vm1011 = vweird.f32 %v1005
      %vm1012 = vmor %vm1010, %vm1011
      %v1013 = vsel %vm1012, %v1005, %v1009
      %v1014 = vand.u32 2147483647, %v880
      %vm1015 = vcmp.eq.f32.partialorder %v1014, 8.507059e+37
      %v1016 = vand.u32 %v880, 2147483648
      %v1017 = vor.u32 1.1754944e-38, %v1016
      %v1018 = vsel %vm1015, %v1017, %v1013
      %v1019 = vmul.f32 1.0, %v1018
      %v1020 = vrcp.pop %v881
      %v1021 = vmul.f32 %v881, %v1020
      %v1022 = vsub.f32 1.0, %v1021
      %v1023 = vmul.f32 %v1020, %v1022
      %v1024 = vadd.f32 %v1020, %v1023
      %vm1025 = vweird.f32 %v881
      %vm1026 = vweird.f32 %v1020
      %vm1027 = vmor %vm1025, %vm1026
      %v1028 = vsel %vm1027, %v1020, %v1024
      %v1029 = vand.u32 2147483647, %v881
      %vm1030 = vcmp.eq.f32.partialorder %v1029, 8.507059e+37
      %v1031 = vand.u32 %v881, 2147483648
      %v1032 = vor.u32 1.1754944e-38, %v1031
      %v1033 = vsel %vm1030, %v1032, %v1028
      %v1034 = vmul.f32 1.0, %v1033
      %v1035 = vrcp.pop %v882
      %v1036 = vmul.f32 %v882, %v1035
      %v1037 = vsub.f32 1.0, %v1036
      %v1038 = vmul.f32 %v1035, %v1037
      %v1039 = vadd.f32 %v1035, %v1038
      %vm1040 = vweird.f32 %v882
      %vm1041 = vweird.f32 %v1035
      %vm1042 = vmor %vm1040, %vm1041
      %v1043 = vsel %vm1042, %v1035, %v1039
      %v1044 = vand.u32 2147483647, %v882
      %vm1045 = vcmp.eq.f32.partialorder %v1044, 8.507059e+37
      %v1046 = vand.u32 %v882, 2147483648
      %v1047 = vor.u32 1.1754944e-38, %v1046
      %v1048 = vsel %vm1045, %v1047, %v1043
      %v1049 = vmul.f32 1.0, %v1048
      %v1050 = vrcp.pop %v883
      %v1051 = vmul.f32 %v883, %v1050
      %v1052 = vsub.f32 1.0, %v1051
      %v1053 = vmul.f32 %v1050, %v1052
      %v1054 = vadd.f32 %v1050, %v1053
      %vm1055 = vweird.f32 %v883
      %vm1056 = vweird.f32 %v1050
      %vm1057 = vmor %vm1055, %vm1056
      %v1058 = vsel %vm1057, %v1050, %v1054
      %v1059 = vand.u32 2147483647, %v883
      %vm1060 = vcmp.eq.f32.partialorder %v1059, 8.507059e+37
      %v1061 = vand.u32 %v883, 2147483648
      %v1062 = vor.u32 1.1754944e-38, %v1061
      %v1063 = vsel %vm1060, %v1062, %v1058
      %v1064 = vmul.f32 1.0, %v1063
      %v1065 = vrcp.pop %v884
      %v1066 = vmul.f32 %v884, %v1065
      %v1067 = vsub.f32 1.0, %v1066
      %v1068 = vmul.f32 %v1065, %v1067
      %v1069 = vadd.f32 %v1065, %v1068
      %vm1070 = vweird.f32 %v884
      %vm1071 = vweird.f32 %v1065
      %vm1072 = vmor %vm1070, %vm1071
      %v1073 = vsel %vm1072, %v1065, %v1069
      %v1074 = vand.u32 2147483647, %v884
      %vm1075 = vcmp.eq.f32.partialorder %v1074, 8.507059e+37
      %v1076 = vand.u32 %v884, 2147483648
      %v1077 = vor.u32 1.1754944e-38, %v1076
      %v1078 = vsel %vm1075, %v1077, %v1073
      %v1079 = vmul.f32 1.0, %v1078
      %1093 = vrot.lane.b32.xlu0 %v488, 96
      %v1094 = vpop.permute.xlu0 %1093
      %1095 = vrot.lane.b32.xlu0 %v489, 96
      %v1096 = vpop.permute.xlu0 %1095
      %1097 = vrot.lane.b32.xlu0 %v490, 96
      %v1098 = vpop.permute.xlu0 %1097
      %1099 = vrot.lane.b32.xlu0 %v491, 96
      %v1100 = vpop.permute.xlu0 %1099
      %1101 = vrot.lane.b32.xlu0 %v492, 96
      %v1102 = vpop.permute.xlu0 %1101
      %1103 = vrot.lane.b32.xlu0 %v493, 96
      %v1104 = vpop.permute.xlu0 %1103
      %1105 = vrot.lane.b32.xlu0 %v494, 96
      %v1106 = vpop.permute.xlu0 %1105
      %1107 = vrot.lane.b32.xlu0 %v495, 96
      %v1108 = vpop.permute.xlu0 %1107
      %1109 = vrot.lane.b32.xlu0 %v496, 96
      %v1110 = vpop.permute.xlu0 %1109
      %1111 = vrot.lane.b32.xlu0 %v497, 96
      %v1112 = vpop.permute.xlu0 %1111
      %1113 = vrot.lane.b32.xlu0 %v498, 96
      %v1114 = vpop.permute.xlu0 %1113
      %1115 = vrot.lane.b32.xlu0 %v499, 96
      %v1116 = vpop.permute.xlu0 %1115
      %1117 = vrot.lane.b32.xlu0 %v500, 96
      %v1118 = vpop.permute.xlu0 %1117
      %1145 = vrot.lane.b32.xlu0 %v899, 1
      %v1146 = vpop.permute.xlu0 %1145
      %1147 = vrot.lane.b32.xlu0 %v914, 1
      %v1148 = vpop.permute.xlu0 %1147
      %1149 = vrot.lane.b32.xlu0 %v929, 1
      %v1150 = vpop.permute.xlu0 %1149
      %1151 = vrot.lane.b32.xlu0 %v944, 1
      %v1152 = vpop.permute.xlu0 %1151
      %1153 = vrot.lane.b32.xlu0 %v959, 1
      %v1154 = vpop.permute.xlu0 %1153
      %1155 = vrot.lane.b32.xlu0 %v974, 1
      %v1156 = vpop.permute.xlu0 %1155
      %1157 = vrot.lane.b32.xlu0 %v989, 1
      %v1158 = vpop.permute.xlu0 %1157
      %1159 = vrot.lane.b32.xlu0 %v1004, 1
      %v1160 = vpop.permute.xlu0 %1159
      %1161 = vrot.lane.b32.xlu0 %v1019, 1
      %v1162 = vpop.permute.xlu0 %1161
      %1163 = vrot.lane.b32.xlu0 %v1034, 1
      %v1164 = vpop.permute.xlu0 %1163
      %1165 = vrot.lane.b32.xlu0 %v1049, 1
      %v1166 = vpop.permute.xlu0 %1165
      %1167 = vrot.lane.b32.xlu0 %v1064, 1
      %v1168 = vpop.permute.xlu0 %1167
      %1169 = vrot.lane.b32.xlu0 %v1079, 1
      %v1170 = vpop.permute.xlu0 %1169
      %vm1184 = vcmask 7168
      %v1185 = vsel %vm1184, %v1094, %v1146
      %v1186 = vsel %vm1184, %v1096, %v1148
      %v1187 = vsel %vm1184, %v1098, %v1150
      %v1188 = vsel %vm1184, %v1100, %v1152
      %v1189 = vsel %vm1184, %v1102, %v1154
      %v1190 = vsel %vm1184, %v1104, %v1156
      %v1191 = vsel %vm1184, %v1106, %v1158
      %v1192 = vsel %vm1184, %v1108, %v1160
      %v1193 = vsel %vm1184, %v1110, %v1162
      %v1194 = vsel %vm1184, %v1112, %v1164
      %v1195 = vsel %vm1184, %v1114, %v1166
      %v1196 = vsel %vm1184, %v1116, %v1168
      %v1197 = vsel %vm1184, %v1118, %v1170
      %vm1198 = vcmask 31744
      %1199 = vst.msk [vmem:[%s356] sm:$0xff] %vm1198, %v1185
      %1200 = vst.msk [vmem:[%s356 + $0x8] sm:$0xff] %vm1198, %v1186
      %1201 = vst.msk [vmem:[%s356 + $0x10] sm:$0xff] %vm1198, %v1187
      %1202 = vst.msk [vmem:[%s356 + $0x18] sm:$0xff] %vm1198, %v1188
      %1203 = vst.msk [vmem:[%s356 + $0x20] sm:$0xff] %vm1198, %v1189
      %1204 = vst.msk [vmem:[%s356 + $0x28] sm:$0xff] %vm1198, %v1190
      %1205 = vst.msk [vmem:[%s356 + $0x30] sm:$0xff] %vm1198, %v1191
      %1206 = vst.msk [vmem:[%s356 + $0x38] sm:$0xff] %vm1198, %v1192
      %1207 = vst.msk [vmem:[%s356 + $0x40] sm:$0xff] %vm1198, %v1193
      %1208 = vst.msk [vmem:[%s356 + $0x48] sm:$0xff] %vm1198, %v1194
      %1209 = vst.msk [vmem:[%s356 + $0x50] sm:$0xff] %vm1198, %v1195
      %1210 = vst.msk [vmem:[%s356 + $0x58] sm:$0xff] %vm1198, %v1196
      %1211 = vst.msk [vmem:[%s356 + $0x60] sm:$0xff] %vm1198, %v1197
      %s1212 = smul.u32 13, %s20
      %p1213 = scmp.lt.s32.totalorder %s1212, 25
      %s1214 = scalar_select %p1213, %s1212, 25
      %s1215 = smul.addr %s1214, 8
      %s1216 = scalar_lea.vmem %s9, %s1215
      // Predicated region
      $region57: #{tpu_custom_call.1} parent=55 // pred_check
        %p1217 = pneg %p237
      $region58: #{tpu_custom_call.1} parent=55 // pred_check_branch
        %1219 = sbr.rel (%p1217) target = $region60
      $region59: #{tpu_custom_call.1} parent=55 // pred_region
        %s1220 = smul.u32 13, %s20
      $region60: #{tpu_custom_call.1} parent=55 // pred_fallthru
        _
    $region56: #{tpu_custom_call.1} parent=5 // pred_fallthru
      _
    %p1221 = scmp.le.s32.totalorder 2, %s15
    // Predicated region
    $region61: #{tpu_custom_call.1} parent=5 // pred_check
      %p1222 = pneg %p1221
    $region62: #{tpu_custom_call.1} parent=5 // pred_check_branch
      %1224 = sbr.rel (%p1222) target = $region64
    $region63: #{tpu_custom_call.1} parent=5 // pred_region
      %s1225 = ssub.s32 %s15, 2
      // Predicated region
      $region65: #{tpu_custom_call.1} parent=63 // pred_check
        %p1226 = pneg %p243
      $region66: #{tpu_custom_call.1} parent=63 // pred_check_branch
        %1228 = sbr.rel (%p1226) target = $region68
      $region67: #{tpu_custom_call.1} parent=63 // pred_region
        %s1229 = smul.u32 13, %s21
        %p1230 = scmp.lt.s32.totalorder %s1229, 25
        %s1231 = scalar_select %p1230, %s1229, 25
        %s1232 = smul.addr %s1231, 8
        %s1233 = scalar_lea.vmem %s9, %s1232
      $region68: #{tpu_custom_call.1} parent=63 // pred_fallthru
        _
    $region64: #{tpu_custom_call.1} parent=5 // pred_fallthru
      _
  $region6: #{tpu_custom_call.1} parent=0 // loop_footer
    %s19 = sadd.s32 1, %s15
  $region7: #{tpu_custom_call.1} parent=0 // loop_footer_branch
    %14 = sbr.rel target = $region3
  $region8: #{tpu_custom_call.1} parent=0 // loop_exit
    _

</llo_original>
